<compile_context>
chip_gen: v6e
topology: v6e:2x2x1
jax: 0.10.0
libtpu: 0.0.40
codegen_flags: <defaults>
</compile_context>

<pallas_src>
import jax
import jax.numpy as jnp
from jax.experimental import pallas as pl
from jax.experimental.pallas import tpu as pltpu


def critic_kernel(obs_ref, act_ref, w1o_ref, w1a_ref, b1_ref, w2_ref, b2_ref,
                  w3_ref, b3_ref, o_ref):
    # obs: (tb, Do), act: (tb, Da)                       -- caller dtype, cast here
    # w1o: (Do, Hp), w1a: (Da, Hp), w2: (Hp, Hp), w3: (Hp, 128) -- compute dtype
    # b1/b2: (1, Hp) f32, b3: (1, 128) f32
    # o:   (tb, 128) f32 (column 0 is q; columns 1..127 are zero padding)
    cd = w2_ref.dtype  # compute dtype (bf16 or f32); accumulation is always f32.

    obs = obs_ref[...].astype(cd)   # in-kernel cast: no extra wrapper HBM pass
    act = act_ref[...].astype(cd)

    h1 = (jnp.dot(obs, w1o_ref[...], preferred_element_type=jnp.float32)
          + jnp.dot(act, w1a_ref[...], preferred_element_type=jnp.float32)
          + b1_ref[...])
    h1 = jnp.maximum(h1, 0.0).astype(cd)

    h2 = jnp.dot(h1, w2_ref[...], preferred_element_type=jnp.float32) + b2_ref[...]
    h2 = jnp.maximum(h2, 0.0).astype(cd)

    # Final layer as a plain MXU matmul against the (Hp, 128) zero-padded w3.
    # N=1 -> N=128 padding costs no extra MXU passes and the store is unmasked.
    q = jnp.dot(h2, w3_ref[...], preferred_element_type=jnp.float32) + b3_ref[...]
    o_ref[...] = q.astype(o_ref.dtype)


def _round_up(x, m):
    return ((x + m - 1) // m) * m


def _choose_tiling(B):
    """Return (padded_batch, batch_tile)."""
    if B >= 512:
        # Prefer large MXU-friendly M tiles, but keep enough grid steps for input
        # pipelining and for v7x's two TensorCores (e.g. B=512 -> tb=128, 4 steps).
        for tb, min_steps in ((512, 4), (256, 3), (128, 2)):
            if B % tb == 0 and B // tb >= min_steps:
                return B, tb
        return _round_up(B, 256), 256   # awkward large batch: pad, 256-row tiles
    if B >= 256 and B % 128 == 0:
        return B, 128                   # at least 2 grid steps
    # Small / awkward batch: one grid step over the (8-aligned) full batch.
    Bp = _round_up(B, 8)
    return Bp, Bp


def _vmem_limit_bytes(tb, Do, Da, Hp, cd_bytes, in_bytes):
    weights = cd_bytes * ((Do + Da) * Hp + Hp * Hp + Hp * 128) + 4 * (2 * Hp + 128)  # x1 (Buffered(1))
    streams = 2 * tb * (Do + Da) * in_bytes + 2 * tb * 128 * 4                       # x2 (double-buffered)
    interm = 3 * tb * Hp * 4                                                          # h1/h2 (+ casts), f32
    need = weights + streams + interm
    # ~50% headroom; floor at the v6e/v7x default (32 MiB), never above v7x's 64 MiB
    # physical VMEM (v5e/v6e have 128 MiB physical, so 64 MiB is safe everywhere).
    return int(min(max(int(need * 1.5) + (2 << 20), 32 << 20), 64 << 20))


def prepare_params(params, obs_dim, compute_dtype=jnp.float32):
    """One-time prep: split w1, zero-pad H to a multiple of 128, pad w3/b3 to 128
    output columns, cast weights to the compute dtype (biases stay f32)."""
    w1, b1, w2, b2, w3, b3 = params
    D, H = w1.shape
    assert 0 < obs_dim < D
    Hp = _round_up(H, 128)
    ph = Hp - H
    w1_obs = jnp.pad(w1[:obs_dim], ((0, 0), (0, ph))).astype(compute_dtype)
    w1_act = jnp.pad(w1[obs_dim:], ((0, 0), (0, ph))).astype(compute_dtype)
    b1p = jnp.pad(b1.reshape(1, H), ((0, 0), (0, ph))).astype(jnp.float32)
    w2p = jnp.pad(w2, ((0, ph), (0, ph))).astype(compute_dtype)
    b2p = jnp.pad(b2.reshape(1, H), ((0, 0), (0, ph))).astype(jnp.float32)
    w3p = jnp.pad(w3.reshape(H, 1), ((0, ph), (0, 127))).astype(compute_dtype)
    b3p = jnp.pad(b3.reshape(1, 1), ((0, 0), (0, 127))).astype(jnp.float32)
    return (w1_obs, w1_act, b1p, w2p, b2p, w3p, b3p)


@jax.jit
def critic_forward(obs, action, kparams):
    """Pallas implementation of Critic.forward: q = MLP(concat([obs, action], -1))."""
    w1_obs, w1_act, b1, w2, b2, w3, b3 = kparams
    B, Do = obs.shape
    _, Da = action.shape
    Hp = w2.shape[0]
    cd_bytes = jnp.dtype(w2.dtype).itemsize
    in_bytes = jnp.dtype(obs.dtype).itemsize

    Bp, tb = _choose_tiling(B)
    if Bp != B:
        obs = jnp.pad(obs, ((0, Bp - B), (0, 0)))
        action = jnp.pad(action, ((0, Bp - B), (0, 0)))
    grid = (Bp // tb,)

    resident = dict(pipeline_mode=pl.Buffered(1))  # single-buffer constant operands

    cost = pl.CostEstimate(
        flops=2 * Bp * Hp * (Do + Da + Hp + 128),
        transcendentals=0,
        bytes_accessed=(cd_bytes * ((Do + Da) * Hp + Hp * Hp + Hp * 128)
                        + 4 * (2 * Hp + 128)
                        + Bp * (Do + Da) * in_bytes
                        + Bp * 128 * 4),
    )

    out = pl.pallas_call(
        critic_kernel,
        out_shape=jax.ShapeDtypeStruct((Bp, 128), jnp.float32),
        grid_spec=pltpu.PrefetchScalarGridSpec(
            num_scalar_prefetch=0,
            grid=grid,
            in_specs=[
                pl.BlockSpec((tb, Do), lambda i: (i, 0)),               # obs tile (pipelined)
                pl.BlockSpec((tb, Da), lambda i: (i, 0)),               # action tile (pipelined)
                pl.BlockSpec((Do, Hp), lambda i: (0, 0), **resident),   # w1_obs (VMEM-resident)
                pl.BlockSpec((Da, Hp), lambda i: (0, 0), **resident),   # w1_act
                pl.BlockSpec((1, Hp), lambda i: (0, 0), **resident),    # b1 (f32)
                pl.BlockSpec((Hp, Hp), lambda i: (0, 0), **resident),   # w2
                pl.BlockSpec((1, Hp), lambda i: (0, 0), **resident),    # b2 (f32)
                pl.BlockSpec((Hp, 128), lambda i: (0, 0), **resident),  # w3 (padded cols)
                pl.BlockSpec((1, 128), lambda i: (0, 0), **resident),   # b3 (padded cols)
            ],
            out_specs=pl.BlockSpec((tb, 128), lambda i: (i, 0)),        # lane-dense q slab
        ),
        compiler_params=pltpu.CompilerParams(
            # TODO(synk): verify on v7x that "parallel" shards the batch axis across
            # both TensorCores (else switch to pltpu.CORE_PARALLEL / core_map split).
            dimension_semantics=("parallel",),
            vmem_limit_bytes=_vmem_limit_bytes(tb, Do, Da, Hp, cd_bytes, in_bytes),
        ),
        cost_estimate=cost,
    )(obs, action, w1_obs, w1_act, b1, w2, b2, w3, b3)
    return out[:B, :1]


def init_params(key, repr_dim, action_dim, hidden_dim, dtype=jnp.float32):
    # Deterministic synthetic init.
    # TODO(synk): utils.weight_init (orthogonal init) not reproduced; affects values
    # only, not the forward-pass structure.
    D = repr_dim + action_dim
    H = hidden_dim
    k1, k2, k3, k4, k5, k6 = jax.random.split(key, 6)
    w1 = (jax.random.normal(k1, (D, H), dtype) / jnp.sqrt(D)).astype(dtype)
    b1 = (0.1 * jax.random.normal(k4, (H,), dtype)).astype(dtype)
    w2 = (jax.random.normal(k2, (H, H), dtype) / jnp.sqrt(H)).astype(dtype)
    b2 = (0.1 * jax.random.normal(k5, (H,), dtype)).astype(dtype)
    w3 = (jax.random.normal(k3, (H, 1), dtype) / jnp.sqrt(H)).astype(dtype)
    b3 = (0.1 * jax.random.normal(k6, (1,), dtype)).astype(dtype)
    return (w1, b1, w2, b2, w3, b3)


def critic_ref(obs, action, params):
    # Pure-JAX reference (mirrors the PyTorch module) for correctness checking.
    w1, b1, w2, b2, w3, b3 = params
    x = jnp.concatenate([obs, action], axis=-1)
    h1 = jnp.maximum(x @ w1 + b1.reshape(1, -1), 0.0)
    h2 = jnp.maximum(h1 @ w2 + b2.reshape(1, -1), 0.0)
    return h2 @ w3 + b3.reshape(1, 1)


if __name__ == "__main__":
    repr_dim = 32
    action_dim = 4
    hidden_dim = 32
    batch = 8

    key = jax.random.PRNGKey(0)
    k_obs, k_act, k_params = jax.random.split(key, 3)

    obs = jax.random.normal(k_obs, (batch, repr_dim), jnp.float32)
    action = jax.random.normal(k_act, (batch, action_dim), jnp.float32)
    params = init_params(k_params, repr_dim, action_dim, hidden_dim)
    q_ref = critic_ref(obs, action, params)

    # f32 weight path.  Tolerance covers MXU default-precision f32 (bf16-pass)
    # matmuls on either side of the comparison; structural bugs would be O(1) off.
    kparams_f32 = prepare_params(params, repr_dim, compute_dtype=jnp.float32)
    q = jax.block_until_ready(critic_forward(obs, action, kparams_f32))
    assert q.shape == (batch, 1)
    assert jnp.allclose(q, q_ref, atol=2e-2, rtol=2e-2), "f32 mismatch vs reference"

    # bf16-weight / f32-accumulate path (recommended for large hidden dims and on
    # v5e, whose MXU is natively bf16); inputs are cast in-kernel, not in the wrapper.
    kparams_bf16 = prepare_params(params, repr_dim, compute_dtype=jnp.bfloat16)
    q_bf = jax.block_until_ready(critic_forward(obs, action, kparams_bf16))
    assert q_bf.shape == (batch, 1)
    assert jnp.allclose(q_bf, q_ref, atol=1.5e-1, rtol=1.5e-1), "bf16 mismatch vs reference"

    print("KERNEL_OK")
</pallas_src>

<mosaic_0001>
module attributes {stable_mosaic.version = 11 : i64} {
  func.func @critic_kernel(%arg0: i32, %arg1: memref<8x32xf32, #tpu.memory_space<vmem>>, %arg2: memref<8x4xf32, #tpu.memory_space<vmem>>, %arg3: memref<32x128xf32, #tpu.memory_space<vmem>>, %arg4: memref<4x128xf32, #tpu.memory_space<vmem>>, %arg5: memref<1x128xf32, #tpu.memory_space<vmem>>, %arg6: memref<128x128xf32, #tpu.memory_space<vmem>>, %arg7: memref<1x128xf32, #tpu.memory_space<vmem>>, %arg8: memref<128x128xf32, #tpu.memory_space<vmem>>, %arg9: memref<1x128xf32, #tpu.memory_space<vmem>>, %arg10: memref<8x128xf32, #tpu.memory_space<vmem>>) attributes {dimension_semantics = [#tpu.dimension_semantics<parallel>], iteration_bounds = array<i64: 1>, scalar_prefetch = 0 : i64, scratch_operands = 0 : i64, tpu.core_type = #tpu.core_type<tc>, window_params = [{transform_indices = @transform_0, window_bounds = array<i64: 8, 32>}, {transform_indices = @transform_1, window_bounds = array<i64: 8, 4>}, {pipeline_mode = #tpu.pipeline_mode<synchronous>, transform_indices = @transform_2, window_bounds = array<i64: 32, 128>}, {pipeline_mode = #tpu.pipeline_mode<synchronous>, transform_indices = @transform_3, window_bounds = array<i64: 4, 128>}, {pipeline_mode = #tpu.pipeline_mode<synchronous>, transform_indices = @transform_4, window_bounds = array<i64: 1, 128>}, {pipeline_mode = #tpu.pipeline_mode<synchronous>, transform_indices = @transform_5, window_bounds = array<i64: 128, 128>}, {pipeline_mode = #tpu.pipeline_mode<synchronous>, transform_indices = @transform_6, window_bounds = array<i64: 1, 128>}, {pipeline_mode = #tpu.pipeline_mode<synchronous>, transform_indices = @transform_7, window_bounds = array<i64: 128, 128>}, {pipeline_mode = #tpu.pipeline_mode<synchronous>, transform_indices = @transform_8, window_bounds = array<i64: 1, 128>}, {transform_indices = @transform_9, window_bounds = array<i64: 8, 128>}]} {
    %c0 = arith.constant 0 : index
    %c0_0 = arith.constant 0 : index
    %0 = vector.load %arg1[%c0, %c0_0] : memref<8x32xf32, #tpu.memory_space<vmem>>, vector<8x32xf32>
    %c0_1 = arith.constant 0 : index
    %c0_2 = arith.constant 0 : index
    %1 = vector.load %arg2[%c0_1, %c0_2] : memref<8x4xf32, #tpu.memory_space<vmem>>, vector<8x4xf32>
    %c0_3 = arith.constant 0 : index
    %c0_4 = arith.constant 0 : index
    %2 = vector.load %arg3[%c0_3, %c0_4] : memref<32x128xf32, #tpu.memory_space<vmem>>, vector<32x128xf32>
    %cst = arith.constant dense<0.000000e+00> : vector<8x128xf32>
    %3 = tpu.matmul %0, %2, %cst {dimension_numbers = #tpu.dot_dimension_numbers<[1], [0], [0], [1], [0, 0, 1, 1], [], []>} : vector<8x32xf32>, vector<32x128xf32>, vector<8x128xf32> -> vector<8x128xf32>
    %c0_5 = arith.constant 0 : index
    %c0_6 = arith.constant 0 : index
    %4 = vector.load %arg4[%c0_5, %c0_6] : memref<4x128xf32, #tpu.memory_space<vmem>>, vector<4x128xf32>
    %cst_7 = arith.constant dense<0.000000e+00> : vector<8x128xf32>
    %5 = tpu.matmul %1, %4, %cst_7 {dimension_numbers = #tpu.dot_dimension_numbers<[1], [0], [0], [1], [0, 0, 1, 1], [], []>} : vector<8x4xf32>, vector<4x128xf32>, vector<8x128xf32> -> vector<8x128xf32>
    %6 = arith.addf %3, %5 : vector<8x128xf32>
    %c0_8 = arith.constant 0 : index
    %c0_9 = arith.constant 0 : index
    %7 = vector.load %arg5[%c0_8, %c0_9] : memref<1x128xf32, #tpu.memory_space<vmem>>, vector<1x128xf32>
    %8 = vector.broadcast %7 : vector<1x128xf32> to vector<8x128xf32>
    %9 = arith.addf %6, %8 : vector<8x128xf32>
    %cst_10 = arith.constant 0.000000e+00 : f32
    %10 = vector.broadcast %cst_10 : f32 to vector<8x128xf32>
    %11 = arith.maximumf %9, %10 : vector<8x128xf32>
    %c0_11 = arith.constant 0 : index
    %c0_12 = arith.constant 0 : index
    %12 = vector.load %arg6[%c0_11, %c0_12] : memref<128x128xf32, #tpu.memory_space<vmem>>, vector<128x128xf32>
    %cst_13 = arith.constant dense<0.000000e+00> : vector<8x128xf32>
    %13 = tpu.matmul %11, %12, %cst_13 {dimension_numbers = #tpu.dot_dimension_numbers<[1], [0], [0], [1], [0, 0, 1, 1], [], []>} : vector<8x128xf32>, vector<128x128xf32>, vector<8x128xf32> -> vector<8x128xf32>
    %c0_14 = arith.constant 0 : index
    %c0_15 = arith.constant 0 : index
    %14 = vector.load %arg7[%c0_14, %c0_15] : memref<1x128xf32, #tpu.memory_space<vmem>>, vector<1x128xf32>
    %15 = vector.broadcast %14 : vector<1x128xf32> to vector<8x128xf32>
    %16 = arith.addf %13, %15 : vector<8x128xf32>
    %cst_16 = arith.constant 0.000000e+00 : f32
    %17 = vector.broadcast %cst_16 : f32 to vector<8x128xf32>
    %18 = arith.maximumf %16, %17 : vector<8x128xf32>
    %c0_17 = arith.constant 0 : index
    %c0_18 = arith.constant 0 : index
    %19 = vector.load %arg8[%c0_17, %c0_18] : memref<128x128xf32, #tpu.memory_space<vmem>>, vector<128x128xf32>
    %cst_19 = arith.constant dense<0.000000e+00> : vector<8x128xf32>
    %20 = tpu.matmul %18, %19, %cst_19 {dimension_numbers = #tpu.dot_dimension_numbers<[1], [0], [0], [1], [0, 0, 1, 1], [], []>} : vector<8x128xf32>, vector<128x128xf32>, vector<8x128xf32> -> vector<8x128xf32>
    %c0_20 = arith.constant 0 : index
    %c0_21 = arith.constant 0 : index
    %21 = vector.load %arg9[%c0_20, %c0_21] : memref<1x128xf32, #tpu.memory_space<vmem>>, vector<1x128xf32>
    %22 = vector.broadcast %21 : vector<1x128xf32> to vector<8x128xf32>
    %23 = arith.addf %20, %22 : vector<8x128xf32>
    %c0_22 = arith.constant 0 : index
    %c0_23 = arith.constant 0 : index
    %24 = vector.load %arg10[%c0_22, %c0_23] : memref<8x128xf32, #tpu.memory_space<vmem>>, vector<8x128xf32>
    tpu.vector_store %arg10[%c0_22, %c0_23], %23 {strides = array<i32>} : memref<8x128xf32, #tpu.memory_space<vmem>>, vector<8x128xf32>,
    return
  }
  func.func @transform_0(%arg0: i32) -> (i32, i32) {
    %c0_i32 = arith.constant 0 : i32
    %c0_i32_0 = arith.constant 0 : i32
    return %arg0, %c0_i32 : i32, i32
  }
  func.func @transform_1(%arg0: i32) -> (i32, i32) {
    %c0_i32 = arith.constant 0 : i32
    %c0_i32_0 = arith.constant 0 : i32
    return %arg0, %c0_i32 : i32, i32
  }
  func.func @transform_2(%arg0: i32) -> (i32, i32) {
    %c0_i32 = arith.constant 0 : i32
    %c0_i32_0 = arith.constant 0 : i32
    %c0_i32_1 = arith.constant 0 : i32
    return %c0_i32, %c0_i32_0 : i32, i32
  }
  func.func @transform_3(%arg0: i32) -> (i32, i32) {
    %c0_i32 = arith.constant 0 : i32
    %c0_i32_0 = arith.constant 0 : i32
    %c0_i32_1 = arith.constant 0 : i32
    return %c0_i32, %c0_i32_0 : i32, i32
  }
  func.func @transform_4(%arg0: i32) -> (i32, i32) {
    %c0_i32 = arith.constant 0 : i32
    %c0_i32_0 = arith.constant 0 : i32
    %c0_i32_1 = arith.constant 0 : i32
    return %c0_i32, %c0_i32_0 : i32, i32
  }
  func.func @transform_5(%arg0: i32) -> (i32, i32) {
    %c0_i32 = arith.constant 0 : i32
    %c0_i32_0 = arith.constant 0 : i32
    %c0_i32_1 = arith.constant 0 : i32
    return %c0_i32, %c0_i32_0 : i32, i32
  }
  func.func @transform_6(%arg0: i32) -> (i32, i32) {
    %c0_i32 = arith.constant 0 : i32
    %c0_i32_0 = arith.constant 0 : i32
    %c0_i32_1 = arith.constant 0 : i32
    return %c0_i32, %c0_i32_0 : i32, i32
  }
  func.func @transform_7(%arg0: i32) -> (i32, i32) {
    %c0_i32 = arith.constant 0 : i32
    %c0_i32_0 = arith.constant 0 : i32
    %c0_i32_1 = arith.constant 0 : i32
    return %c0_i32, %c0_i32_0 : i32, i32
  }
  func.func @transform_8(%arg0: i32) -> (i32, i32) {
    %c0_i32 = arith.constant 0 : i32
    %c0_i32_0 = arith.constant 0 : i32
    %c0_i32_1 = arith.constant 0 : i32
    return %c0_i32, %c0_i32_0 : i32, i32
  }
  func.func @transform_9(%arg0: i32) -> (i32, i32) {
    %c0_i32 = arith.constant 0 : i32
    %c0_i32_0 = arith.constant 0 : i32
    return %arg0, %c0_i32 : i32, i32
  }
}

</mosaic_0001>

<llo_original>
// kernel: critic_forward.1
$region0: #{critic_forward.1}
  #allocation0 [shape = 'u32[]', space=smem, size = 0x4, offset = 0x4, fixed_abs, tag = 'smem constant byte address 0x4 - core index']
  #allocation1 [shape = 'u32[144,128]{1,0:T(1,128)}', space=vmem, size = 0x12000, scoped, tag = 'internal scratch']
  %s0 = inlined_call_operand.vmem [shape: f32[8,32], index: 0, kind: input, shape index: {}]
  %s1 = inlined_call_operand.vmem [shape: f32[8,4], index: 1, kind: input, shape index: {}]
  %s2 = inlined_call_operand.hbm [shape: f32[32,128], index: 2, kind: input, shape index: {}]
  %s3 = inlined_call_operand.vmem [shape: f32[4,128], index: 3, kind: input, shape index: {}]
  %s4 = inlined_call_operand.vmem [shape: f32[1,128], index: 4, kind: input, shape index: {}]
  %s5 = inlined_call_operand.hbm [shape: f32[128,128], index: 5, kind: input, shape index: {}]
  %s6 = inlined_call_operand.vmem [shape: f32[1,128], index: 6, kind: input, shape index: {}]
  %s7 = inlined_call_operand.hbm [shape: f32[128,128], index: 7, kind: input, shape index: {}]
  %s8 = inlined_call_operand.vmem [shape: f32[1,128], index: 8, kind: input, shape index: {}]
  %s9 = inlined_call_operand.vmem [shape: f32[8,128], index: 9, kind: output, shape index: {}]
  %s10 = sld [smem:[#allocation0]]
  $region58: #{critic_forward.1} parent=0
    _
  %s12 = ssub.s32 1, %s10
  %s13 = scalar_select 0, %s12, %s10
  $region1: #{critic_forward.1} parent=0
    #allocation2 [shape = 'u8[16384]{0}', space=vmem, size = 0x4000, scoped, tag = 'input window, operand 2, single buffered']
    #allocation3 [shape = 's32[1]{0}', space=sflag, size = 0x4, scoped, tag = 'scoped memory for critic_forward.1']
    #allocation4 [shape = 'u8[65536]{0}', space=vmem, size = 0x10000, scoped, tag = 'input window, operand 5, single buffered']
    #allocation5 [shape = 's32[1]{0}', space=sflag, size = 0x4, scoped, tag = 'scoped memory for critic_forward.1']
    #allocation6 [shape = 'u8[65536]{0}', space=vmem, size = 0x10000, scoped, tag = 'input window, operand 7, single buffered']
    %14 = vsyncpa [#allocation3], 0
    %15 = vsyncpa [#allocation5], 0
    // Predicated region
    $region2: #{critic_forward.1} parent=1 // pred_check
      _
    $region3: #{critic_forward.1} parent=1 // pred_check_branch
      %17 = sbr.rel (0) target = $region5
    $region4: #{critic_forward.1} parent=1 // pred_region
      _
    $region5: #{critic_forward.1} parent=1 // pred_fallthru
      _
    // Predicated region
    $region6: #{critic_forward.1} parent=1 // pred_check
      _
    $region7: #{critic_forward.1} parent=1 // pred_check_branch
      %19 = sbr.rel (0) target = $region9
    $region8: #{critic_forward.1} parent=1 // pred_region
      _
    $region9: #{critic_forward.1} parent=1 // pred_fallthru
      _
    // Predicated region
    $region10: #{critic_forward.1} parent=1 // pred_check
      _
    $region11: #{critic_forward.1} parent=1 // pred_check_branch
      %21 = sbr.rel (0) target = $region13
    $region12: #{critic_forward.1} parent=1 // pred_region
      %s23 = ssub.s32 512, 512
      %24 = vsyncadd [#allocation3], %s23
      %s25 = sshll.u32 [#allocation2], 4
      %s26 = int_to_ptr.vmem [resolvable:$true] %s25
      %31 = dma.hbm_to_vmem [thread:$0]  %s2, 512, %s26, [#allocation3], 128, 128, 8
    $region13: #{critic_forward.1} parent=1 // pred_fallthru
      _
    // Predicated region
    $region14: #{critic_forward.1} parent=1 // pred_check
      _
    $region15: #{critic_forward.1} parent=1 // pred_check_branch
      %33 = sbr.rel (0) target = $region17
    $region16: #{critic_forward.1} parent=1 // pred_region
      _
    $region17: #{critic_forward.1} parent=1 // pred_fallthru
      _
    // Predicated region
    $region18: #{critic_forward.1} parent=1 // pred_check
      _
    $region19: #{critic_forward.1} parent=1 // pred_check_branch
      %35 = sbr.rel (0) target = $region21
    $region20: #{critic_forward.1} parent=1 // pred_region
      _
    $region21: #{critic_forward.1} parent=1 // pred_fallthru
      _
    // Predicated region
    $region22: #{critic_forward.1} parent=1 // pred_check
      _
    $region23: #{critic_forward.1} parent=1 // pred_check_branch
      %37 = sbr.rel (0) target = $region25
    $region24: #{critic_forward.1} parent=1 // pred_region
      %s39 = ssub.s32 2048, 2048
      %40 = vsyncadd [#allocation5], %s39
      %s41 = sshll.u32 [#allocation4], 4
      %s42 = int_to_ptr.vmem [resolvable:$true] %s41
      %47 = dma.hbm_to_vmem [thread:$0]  %s5, 2048, %s42, [#allocation5], 128, 128, 8
    $region25: #{critic_forward.1} parent=1 // pred_fallthru
      _
    // Predicated region
    $region26: #{critic_forward.1} parent=1 // pred_check
      _
    $region27: #{critic_forward.1} parent=1 // pred_check_branch
      %49 = sbr.rel (0) target = $region29
    $region28: #{critic_forward.1} parent=1 // pred_region
      _
    $region29: #{critic_forward.1} parent=1 // pred_fallthru
      _
    // Predicated region
    $region30: #{critic_forward.1} parent=1 // pred_check
      _
    $region31: #{critic_forward.1} parent=1 // pred_check_branch
      %51 = sbr.rel (0) target = $region33
    $region32: #{critic_forward.1} parent=1 // pred_region
      %s53 = ssub.s32 2048, 2048
      %54 = vsyncadd [#allocation5], %s53
      %s55 = sshll.u32 [#allocation6], 4
      %s56 = int_to_ptr.vmem [resolvable:$true] %s55
      %61 = dma.hbm_to_vmem [thread:$0]  %s7, 2048, %s56, [#allocation5], 128, 128, 8
    $region33: #{critic_forward.1} parent=1 // pred_fallthru
      _
    // Predicated region
    $region34: #{critic_forward.1} parent=1 // pred_check
      _
    $region35: #{critic_forward.1} parent=1 // pred_check_branch
      %63 = sbr.rel (0) target = $region37
    $region36: #{critic_forward.1} parent=1 // pred_region
      _
    $region37: #{critic_forward.1} parent=1 // pred_fallthru
      _
    // Predicated region
    $region38: #{critic_forward.1} parent=1 // pred_check
      _
    $region39: #{critic_forward.1} parent=1 // pred_check_branch
      %65 = sbr.rel (0) target = $region41
    $region40: #{critic_forward.1} parent=1 // pred_region
      %66 = dma.done [#allocation3], 512
    $region41: #{critic_forward.1} parent=1 // pred_fallthru
      _
    // Predicated region
    $region42: #{critic_forward.1} parent=1 // pred_check
      _
    $region43: #{critic_forward.1} parent=1 // pred_check_branch
      %68 = sbr.rel (0) target = $region45
    $region44: #{critic_forward.1} parent=1 // pred_region
      %69 = dma.done [#allocation5], 2048
    $region45: #{critic_forward.1} parent=1 // pred_fallthru
      _
    // Predicated region
    $region46: #{critic_forward.1} parent=1 // pred_check
      _
    $region47: #{critic_forward.1} parent=1 // pred_check_branch
      %71 = sbr.rel (0) target = $region49
    $region48: #{critic_forward.1} parent=1 // pred_region
      %72 = dma.done [#allocation5], 2048
    $region49: #{critic_forward.1} parent=1 // pred_fallthru
      _
    %v73 = vld [vmem:[%s0] sm:$0xff]
    %v74 = vld [vmem:[%s1] sm:$0xff]
    %v75 = vld [vmem:[#allocation2] sm:$0xff]
    %v76 = vld [vmem:[#allocation2 + $0x8] sm:$0xff]
    %v77 = vld [vmem:[#allocation2 + $0x10] sm:$0xff]
    %v78 = vld [vmem:[#allocation2 + $0x18] sm:$0xff]
    %v79 = vld [vmem:[%s3] sm:$0xf]
    %vm80 = vcmask 31744
    %v82 = vsel %vm80, %v74, 0
    %vm84 = vcmask 1043456
    %v86 = vsel %vm84, %v79, 0
    %88 = vmatprep.subr.mxu0 0.0
    %89 = vmatpush1.msra.mxu0 0.0
    %90 = vmatprep.subr.mxu0 0.0
    %91 = vmatpush1.msra.mxu0 0.0
    %92 = vmatprep.subr.mxu0 0.0
    %93 = vmatpush1.msra.mxu0 0.0
    %94 = vmatprep.subr.mxu0 0.0
    %95 = vmatpush1.msra.mxu0 0.0
    %96 = vmatprep.subr.mxu0 0.0
    %97 = vmatpush1.msra.mxu0 0.0
    %98 = vmatprep.subr.mxu0 0.0
    %99 = vmatpush1.msra.mxu0 0.0
    %100 = vmatprep.subr.mxu0 0.0
    %101 = vmatpush1.msra.mxu0 0.0
    %102 = vmatprep.subr.mxu0 0.0
    %103 = vmatpush1.msra.mxu0 0.0
    %104 = vmatprep.subr.mxu0 0.0
    %105 = vmatpush1.msra.mxu0 0.0
    %106 = vmatprep.subr.mxu0 0.0
    %107 = vmatpush1.msra.mxu0 0.0
    %108 = vmatprep.subr.mxu0 0.0
    %109 = vmatpush1.msra.mxu0 0.0
    %110 = vmatprep.subr.mxu0 0.0
    %111 = vmatpush1.msra.mxu0 0.0
    %112 = vmatprep.subr.mxu0 0.0
    %113 = vmatpush1.msra.mxu0 0.0
    %114 = vmatprep.subr.mxu0 0.0
    %115 = vmatpush1.msra.mxu0 0.0
    %116 = vmatprep.subr.mxu0 0.0
    %117 = vmatpush1.msra.mxu0 0.0
    %118 = vmatprep.subr.mxu0 0.0
    %119 = vmatpush1.msra.mxu0 %v86
    %120 = vmatprep.subr.mxu0 0.0
    %121 = vmatpush2.msra.mxu0 0.0
    %122 = vmatprep.subr.mxu0 0.0
    %123 = vmatpush2.msra.mxu0 0.0
    %124 = vmatprep.subr.mxu0 0.0
    %125 = vmatpush2.msra.mxu0 0.0
    %126 = vmatprep.subr.mxu0 0.0
    %127 = vmatpush2.msra.mxu0 0.0
    %128 = vmatprep.subr.mxu0 0.0
    %129 = vmatpush2.msra.mxu0 0.0
    %130 = vmatprep.subr.mxu0 0.0
    %131 = vmatpush2.msra.mxu0 0.0
    %132 = vmatprep.subr.mxu0 0.0
    %133 = vmatpush2.msra.mxu0 0.0
    %134 = vmatprep.subr.mxu0 0.0
    %135 = vmatpush2.msra.mxu0 0.0
    %136 = vmatprep.subr.mxu0 0.0
    %137 = vmatpush2.msra.mxu0 0.0
    %138 = vmatprep.subr.mxu0 0.0
    %139 = vmatpush2.msra.mxu0 0.0
    %140 = vmatprep.subr.mxu0 0.0
    %141 = vmatpush2.msra.mxu0 0.0
    %142 = vmatprep.subr.mxu0 0.0
    %143 = vmatpush2.msra.mxu0 0.0
    %144 = vmatprep.subr.mxu0 0.0
    %145 = vmatpush2.msra.mxu0 0.0
    %146 = vmatprep.subr.mxu0 0.0
    %147 = vmatpush2.msra.mxu0 0.0
    %148 = vmatprep.subr.mxu0 0.0
    %149 = vmatpush2.msra.mxu0 0.0
    %150 = vmatprep.subr.mxu0 0.0
    %151 = vmatpush2.msra.mxu0 0.0
    %152 = vmatprep.mubr.f32.mxu0 0.0
    %153 = vmatmul.mubr.f32.gmra.mxu0 %v82
    %v154 = vpop.f32.mrf.mxu0
    %v155 = vadd.f32 0.0, %v154
    %v156 = vpop.f32.mrf.mxu0
    %157 = vdwg.mxu0
    %vm158 = vcmask 261120
    %v160 = vsel %vm158, %v73, 0
    %162 = vmatprep.subr.mxu0 0.0
    %163 = vmatpush1.msra.mxu0 0.0
    %164 = vmatprep.subr.mxu0 0.0
    %165 = vmatpush1.msra.mxu0 0.0
    %166 = vmatprep.subr.mxu0 0.0
    %167 = vmatpush1.msra.mxu0 0.0
    %168 = vmatprep.subr.mxu0 0.0
    %169 = vmatpush1.msra.mxu0 0.0
    %170 = vmatprep.subr.mxu0 0.0
    %171 = vmatpush1.msra.mxu0 0.0
    %172 = vmatprep.subr.mxu0 0.0
    %173 = vmatpush1.msra.mxu0 0.0
    %174 = vmatprep.subr.mxu0 0.0
    %175 = vmatpush1.msra.mxu0 0.0
    %176 = vmatprep.subr.mxu0 0.0
    %177 = vmatpush1.msra.mxu0 0.0
    %178 = vmatprep.subr.mxu0 0.0
    %179 = vmatpush1.msra.mxu0 0.0
    %180 = vmatprep.subr.mxu0 0.0
    %181 = vmatpush1.msra.mxu0 0.0
    %182 = vmatprep.subr.mxu0 0.0
    %183 = vmatpush1.msra.mxu0 0.0
    %184 = vmatprep.subr.mxu0 0.0
    %185 = vmatpush1.msra.mxu0 0.0
    %186 = vmatprep.subr.mxu0 0.0
    %187 = vmatpush1.msra.mxu0 %v78
    %188 = vmatprep.subr.mxu0 0.0
    %189 = vmatpush1.msra.mxu0 %v77
    %190 = vmatprep.subr.mxu0 0.0
    %191 = vmatpush1.msra.mxu0 %v76
    %192 = vmatprep.subr.mxu0 0.0
    %193 = vmatpush1.msra.mxu0 %v75
    %194 = vmatprep.subr.mxu0 0.0
    %195 = vmatpush2.msra.mxu0 0.0
    %196 = vmatprep.subr.mxu0 0.0
    %197 = vmatpush2.msra.mxu0 0.0
    %198 = vmatprep.subr.mxu0 0.0
    %199 = vmatpush2.msra.mxu0 0.0
    %200 = vmatprep.subr.mxu0 0.0
    %201 = vmatpush2.msra.mxu0 0.0
    %202 = vmatprep.subr.mxu0 0.0
    %203 = vmatpush2.msra.mxu0 0.0
    %204 = vmatprep.subr.mxu0 0.0
    %205 = vmatpush2.msra.mxu0 0.0
    %206 = vmatprep.subr.mxu0 0.0
    %207 = vmatpush2.msra.mxu0 0.0
    %208 = vmatprep.subr.mxu0 0.0
    %209 = vmatpush2.msra.mxu0 0.0
    %210 = vmatprep.subr.mxu0 0.0
    %211 = vmatpush2.msra.mxu0 0.0
    %212 = vmatprep.subr.mxu0 0.0
    %213 = vmatpush2.msra.mxu0 0.0
    %214 = vmatprep.subr.mxu0 0.0
    %215 = vmatpush2.msra.mxu0 0.0
    %216 = vmatprep.subr.mxu0 0.0
    %217 = vmatpush2.msra.mxu0 0.0
    %218 = vmatprep.subr.mxu0 0.0
    %219 = vmatpush2.msra.mxu0 0.0
    %220 = vmatprep.subr.mxu0 0.0
    %221 = vmatpush2.msra.mxu0 0.0
    %222 = vmatprep.subr.mxu0 0.0
    %223 = vmatpush2.msra.mxu0 0.0
    %224 = vmatprep.subr.mxu0 0.0
    %225 = vmatpush2.msra.mxu0 0.0
    %226 = vmatprep.mubr.f32.mxu0 0.0
    %227 = vmatmul.mubr.f32.gmra.mxu0 %v160
    %v228 = vpop.f32.mrf.mxu0
    %v229 = vadd.f32 %v155, %v228
    %v230 = vpop.f32.mrf.mxu0
    %231 = vdwg.mxu0
    %v232 = vld [vmem:[%s4] sm:$0x1]
    %v234 = vlaneseq
    %v235 = vshrl.u32 %v234, 7
    %v236 = vsub.s32 0, %v235
    %v237 = vrot.slane %v232, %v236
    %v239 = vadd.f32 %v229, %v237
    %v240 = vmax.f32 %v239, 0.0
    %v241 = vld [vmem:[#allocation4] sm:$0xff]
    %v242 = vld [vmem:[#allocation4 + $0x8] sm:$0xff]
    %v243 = vld [vmem:[#allocation4 + $0x10] sm:$0xff]
    %v244 = vld [vmem:[#allocation4 + $0x18] sm:$0xff]
    %v245 = vld [vmem:[#allocation4 + $0x20] sm:$0xff]
    %v246 = vld [vmem:[#allocation4 + $0x28] sm:$0xff]
    %v247 = vld [vmem:[#allocation4 + $0x30] sm:$0xff]
    %v248 = vld [vmem:[#allocation4 + $0x38] sm:$0xff]
    %v249 = vld [vmem:[#allocation4 + $0x40] sm:$0xff]
    %v250 = vld [vmem:[#allocation4 + $0x48] sm:$0xff]
    %v251 = vld [vmem:[#allocation4 + $0x50] sm:$0xff]
    %v252 = vld [vmem:[#allocation4 + $0x58] sm:$0xff]
    %v253 = vld [vmem:[#allocation4 + $0x60] sm:$0xff]
    %v254 = vld [vmem:[#allocation4 + $0x68] sm:$0xff]
    %v255 = vld [vmem:[#allocation4 + $0x70] sm:$0xff]
    %v256 = vld [vmem:[#allocation4 + $0x78] sm:$0xff]
    %v257 = vld [vmem:[%s6] sm:$0x1]
    %v259 = vlaneseq
    %v260 = vshrl.u32 %v259, 7
    %v261 = vsub.s32 0, %v260
    %v262 = vrot.slane %v257, %v261
    %264 = vmatprep.subr.mxu0 0.0
    %265 = vmatpush1.msra.mxu0 %v256
    %266 = vmatprep.subr.mxu0 0.0
    %267 = vmatpush1.msra.mxu0 %v255
    %268 = vmatprep.subr.mxu0 0.0
    %269 = vmatpush1.msra.mxu0 %v254
    %270 = vmatprep.subr.mxu0 0.0
    %271 = vmatpush1.msra.mxu0 %v253
    %272 = vmatprep.subr.mxu0 0.0
    %273 = vmatpush1.msra.mxu0 %v252
    %274 = vmatprep.subr.mxu0 0.0
    %275 = vmatpush1.msra.mxu0 %v251
    %276 = vmatprep.subr.mxu0 0.0
    %277 = vmatpush1.msra.mxu0 %v250
    %278 = vmatprep.subr.mxu0 0.0
    %279 = vmatpush1.msra.mxu0 %v249
    %280 = vmatprep.subr.mxu0 0.0
    %281 = vmatpush1.msra.mxu0 %v248
    %282 = vmatprep.subr.mxu0 0.0
    %283 = vmatpush1.msra.mxu0 %v247
    %284 = vmatprep.subr.mxu0 0.0
    %285 = vmatpush1.msra.mxu0 %v246
    %286 = vmatprep.subr.mxu0 0.0
    %287 = vmatpush1.msra.mxu0 %v245
    %288 = vmatprep.subr.mxu0 0.0
    %289 = vmatpush1.msra.mxu0 %v244
    %290 = vmatprep.subr.mxu0 0.0
    %291 = vmatpush1.msra.mxu0 %v243
    %292 = vmatprep.subr.mxu0 0.0
    %293 = vmatpush1.msra.mxu0 %v242
    %294 = vmatprep.subr.mxu0 0.0
    %295 = vmatpush1.msra.mxu0 %v241
    %296 = vmatprep.subr.mxu0 0.0
    %297 = vmatpush2.msra.mxu0 0.0
    %298 = vmatprep.subr.mxu0 0.0
    %299 = vmatpush2.msra.mxu0 0.0
    %300 = vmatprep.subr.mxu0 0.0
    %301 = vmatpush2.msra.mxu0 0.0
    %302 = vmatprep.subr.mxu0 0.0
    %303 = vmatpush2.msra.mxu0 0.0
    %304 = vmatprep.subr.mxu0 0.0
    %305 = vmatpush2.msra.mxu0 0.0
    %306 = vmatprep.subr.mxu0 0.0
    %307 = vmatpush2.msra.mxu0 0.0
    %308 = vmatprep.subr.mxu0 0.0
    %309 = vmatpush2.msra.mxu0 0.0
    %310 = vmatprep.subr.mxu0 0.0
    %311 = vmatpush2.msra.mxu0 0.0
    %312 = vmatprep.subr.mxu0 0.0
    %313 = vmatpush2.msra.mxu0 0.0
    %314 = vmatprep.subr.mxu0 0.0
    %315 = vmatpush2.msra.mxu0 0.0
    %316 = vmatprep.subr.mxu0 0.0
    %317 = vmatpush2.msra.mxu0 0.0
    %318 = vmatprep.subr.mxu0 0.0
    %319 = vmatpush2.msra.mxu0 0.0
    %320 = vmatprep.subr.mxu0 0.0
    %321 = vmatpush2.msra.mxu0 0.0
    %322 = vmatprep.subr.mxu0 0.0
    %323 = vmatpush2.msra.mxu0 0.0
    %324 = vmatprep.subr.mxu0 0.0
    %325 = vmatpush2.msra.mxu0 0.0
    %326 = vmatprep.subr.mxu0 0.0
    %327 = vmatpush2.msra.mxu0 0.0
    %328 = vmatprep.mubr.f32.mxu0 0.0
    %329 = vmatmul.mubr.f32.gmra.mxu0 %v240
    %v330 = vpop.f32.mrf.mxu0
    %v331 = vadd.f32 %v262, %v330
    %v332 = vpop.f32.mrf.mxu0
    %333 = vdwg.mxu0
    %v334 = vmax.f32 %v331, 0.0
    %v335 = vld [vmem:[#allocation6] sm:$0xff]
    %v336 = vld [vmem:[#allocation6 + $0x8] sm:$0xff]
    %v337 = vld [vmem:[#allocation6 + $0x10] sm:$0xff]
    %v338 = vld [vmem:[#allocation6 + $0x18] sm:$0xff]
    %v339 = vld [vmem:[#allocation6 + $0x20] sm:$0xff]
    %v340 = vld [vmem:[#allocation6 + $0x28] sm:$0xff]
    %v341 = vld [vmem:[#allocation6 + $0x30] sm:$0xff]
    %v342 = vld [vmem:[#allocation6 + $0x38] sm:$0xff]
    %v343 = vld [vmem:[#allocation6 + $0x40] sm:$0xff]
    %v344 = vld [vmem:[#allocation6 + $0x48] sm:$0xff]
    %v345 = vld [vmem:[#allocation6 + $0x50] sm:$0xff]
    %v346 = vld [vmem:[#allocation6 + $0x58] sm:$0xff]
    %v347 = vld [vmem:[#allocation6 + $0x60] sm:$0xff]
    %v348 = vld [vmem:[#allocation6 + $0x68] sm:$0xff]
    %v349 = vld [vmem:[#allocation6 + $0x70] sm:$0xff]
    %v350 = vld [vmem:[#allocation6 + $0x78] sm:$0xff]
    %v351 = vld [vmem:[%s8] sm:$0x1]
    %v353 = vlaneseq
    %v354 = vshrl.u32 %v353, 7
    %v355 = vsub.s32 0, %v354
    %v356 = vrot.slane %v351, %v355
    %358 = vmatprep.subr.mxu0 0.0
    %359 = vmatpush1.msra.mxu0 %v350
    %360 = vmatprep.subr.mxu0 0.0
    %361 = vmatpush1.msra.mxu0 %v349
    %362 = vmatprep.subr.mxu0 0.0
    %363 = vmatpush1.msra.mxu0 %v348
    %364 = vmatprep.subr.mxu0 0.0
    %365 = vmatpush1.msra.mxu0 %v347
    %366 = vmatprep.subr.mxu0 0.0
    %367 = vmatpush1.msra.mxu0 %v346
    %368 = vmatprep.subr.mxu0 0.0
    %369 = vmatpush1.msra.mxu0 %v345
    %370 = vmatprep.subr.mxu0 0.0
    %371 = vmatpush1.msra.mxu0 %v344
    %372 = vmatprep.subr.mxu0 0.0
    %373 = vmatpush1.msra.mxu0 %v343
    %374 = vmatprep.subr.mxu0 0.0
    %375 = vmatpush1.msra.mxu0 %v342
    %376 = vmatprep.subr.mxu0 0.0
    %377 = vmatpush1.msra.mxu0 %v341
    %378 = vmatprep.subr.mxu0 0.0
    %379 = vmatpush1.msra.mxu0 %v340
    %380 = vmatprep.subr.mxu0 0.0
    %381 = vmatpush1.msra.mxu0 %v339
    %382 = vmatprep.subr.mxu0 0.0
    %383 = vmatpush1.msra.mxu0 %v338
    %384 = vmatprep.subr.mxu0 0.0
    %385 = vmatpush1.msra.mxu0 %v337
    %386 = vmatprep.subr.mxu0 0.0
    %387 = vmatpush1.msra.mxu0 %v336
    %388 = vmatprep.subr.mxu0 0.0
    %389 = vmatpush1.msra.mxu0 %v335
    %390 = vmatprep.subr.mxu0 0.0
    %391 = vmatpush2.msra.mxu0 0.0
    %392 = vmatprep.subr.mxu0 0.0
    %393 = vmatpush2.msra.mxu0 0.0
    %394 = vmatprep.subr.mxu0 0.0
    %395 = vmatpush2.msra.mxu0 0.0
    %396 = vmatprep.subr.mxu0 0.0
    %397 = vmatpush2.msra.mxu0 0.0
    %398 = vmatprep.subr.mxu0 0.0
    %399 = vmatpush2.msra.mxu0 0.0
    %400 = vmatprep.subr.mxu0 0.0
    %401 = vmatpush2.msra.mxu0 0.0
    %402 = vmatprep.subr.mxu0 0.0
    %403 = vmatpush2.msra.mxu0 0.0
    %404 = vmatprep.subr.mxu0 0.0
    %405 = vmatpush2.msra.mxu0 0.0
    %406 = vmatprep.subr.mxu0 0.0
    %407 = vmatpush2.msra.mxu0 0.0
    %408 = vmatprep.subr.mxu0 0.0
    %409 = vmatpush2.msra.mxu0 0.0
    %410 = vmatprep.subr.mxu0 0.0
    %411 = vmatpush2.msra.mxu0 0.0
    %412 = vmatprep.subr.mxu0 0.0
    %413 = vmatpush2.msra.mxu0 0.0
    %414 = vmatprep.subr.mxu0 0.0
    %415 = vmatpush2.msra.mxu0 0.0
    %416 = vmatprep.subr.mxu0 0.0
    %417 = vmatpush2.msra.mxu0 0.0
    %418 = vmatprep.subr.mxu0 0.0
    %419 = vmatpush2.msra.mxu0 0.0
    %420 = vmatprep.subr.mxu0 0.0
    %421 = vmatpush2.msra.mxu0 0.0
    %422 = vmatprep.mubr.f32.mxu0 0.0
    %423 = vmatmul.mubr.f32.gmra.mxu0 %v334
    %v424 = vpop.f32.mrf.mxu0
    %v425 = vadd.f32 %v356, %v424
    %v426 = vpop.f32.mrf.mxu0
    %427 = vdwg.mxu0
    %428 = vst [vmem:[%s9] sm:$0xff] %v425
    // Predicated region
    $region50: #{critic_forward.1} parent=1 // pred_check
      _
    $region51: #{critic_forward.1} parent=1 // pred_check_branch
      %430 = sbr.rel (0) target = $region53
    $region52: #{critic_forward.1} parent=1 // pred_region
      _
    $region53: #{critic_forward.1} parent=1 // pred_fallthru
      _
    // Predicated region
    $region54: #{critic_forward.1} parent=1 // pred_check
      _
    $region55: #{critic_forward.1} parent=1 // pred_check_branch
      %432 = sbr.rel (0) target = $region57
    $region56: #{critic_forward.1} parent=1 // pred_region
      _
    $region57: #{critic_forward.1} parent=1 // pred_fallthru
      _
    %433 = vsyncpa [#allocation3], 1
    %434 = vsyncpa [#allocation5], 1

</llo_original>
